<compile_context>
chip_gen: v7x
topology: tpu7x:2x2x1
jax: 0.10.0
libtpu: 0.0.40
codegen_flags: <defaults>
</compile_context>

<pallas_src>
import functools

import jax
import jax.numpy as jnp
from jax.experimental import pallas as pl
from jax.experimental.pallas import tpu as pltpu

LN_EPS = 1e-5      # torch.nn.LayerNorm default eps
NORM_EPS = 1e-12   # torch F.normalize default eps
COS_EPS = 1e-8     # torch F.cosine_similarity default eps

# Contract the last dim of both operands: A (m,k), B (n,k) -> (m,n) == A @ B.T,
# consumed directly by the MXU without materializing a transpose.
_DOT_LAST = (((1,), (1,)), ((), ()))


# --------------------------------------------------------------------------- #
# Kernel A: projectors + L2-norm + cosine sims (both directions) + masked weights
# --------------------------------------------------------------------------- #
def _embed_weights_kernel(ha_ref, ag_ref, ab_ref, aw_ref,
                          ht_ref, tg_ref, tb_ref, tw_ref,
                          bin_ref,
                          za_ref, zt_ref, mw_at_ref, mw_ta_ref):
    def layernorm_linear(x_ref, g_ref, b_ref, w_ref):
        x = x_ref[...]                                          # (B, D) f32
        mean = jnp.mean(x, axis=-1, keepdims=True)
        xc = x - mean
        var = jnp.mean(xc * xc, axis=-1, keepdims=True)         # biased, as torch LN
        y = xc * jax.lax.rsqrt(var + LN_EPS) * g_ref[...] + b_ref[...]
        return jnp.dot(y, w_ref[...], preferred_element_type=jnp.float32)   # (B, M)

    za = layernorm_linear(ha_ref, ag_ref, ab_ref, aw_ref)       # (B, M)
    zt = layernorm_linear(ht_ref, tg_ref, tb_ref, tw_ref)       # (B, M)
    za_ref[...] = za
    zt_ref[...] = zt

    # L2 normalize: x * rsqrt(max(sumsq, eps^2)) == x / max(||x||_2, eps)  (torch F.normalize)
    def l2_normalize(x):
        ss = jnp.sum(x * x, axis=-1, keepdims=True)
        return x * jax.lax.rsqrt(jnp.maximum(ss, NORM_EPS * NORM_EPS))

    an = l2_normalize(za)
    pn = l2_normalize(zt)

    # Cosine similarities for both sampling directions (MXU, contraction on last dims).
    sim_at = jax.lax.dot_general(an, pn, _DOT_LAST, preferred_element_type=jnp.float32)  # (B, B)
    sim_ta = jax.lax.dot_general(pn, an, _DOT_LAST, preferred_element_type=jnp.float32)  # (B, B)

    # Multi-label mask is identical for both directions (depends only on `binary`).
    b = bin_ref[...]                                            # (B, C)
    bb = jax.lax.dot_general(b, b, _DOT_LAST, preferred_element_type=jnp.float32)        # (B, B)
    mask = jnp.sum(b, axis=-1, keepdims=True) - bb
    # nan_to_num(1/mask, posinf=0): zero entries of mask -> weight 0.
    mlm = jnp.where(mask > 0.0, 1.0 / jnp.where(mask > 0.0, mask, 1.0), 0.0)

    mw_at_ref[...] = (sim_at + 1.0) * 0.5 * mlm
    mw_ta_ref[...] = (sim_ta + 1.0) * 0.5 * mlm


def fused_embed_and_weights(h_audio, a_gamma, a_beta, a_w,
                            h_text, t_gamma, t_beta, t_w, binary):
    B, Da = h_audio.shape
    Dt = h_text.shape[1]
    M = a_w.shape[1]
    C = binary.shape[1]
    full = lambda *shape: pl.BlockSpec(shape, lambda i: (0,) * len(shape))
    return pl.pallas_call(
        _embed_weights_kernel,
        out_shape=(jax.ShapeDtypeStruct((B, M), jnp.float32),   # z_audio
                   jax.ShapeDtypeStruct((B, M), jnp.float32),   # z_text
                   jax.ShapeDtypeStruct((B, B), jnp.float32),   # masked weights a->t
                   jax.ShapeDtypeStruct((B, B), jnp.float32)),  # masked weights t->a
        grid=(1,),
        in_specs=[full(B, Da), full(1, Da), full(1, Da), full(Da, M),
                  full(B, Dt), full(1, Dt), full(1, Dt), full(Dt, M),
                  full(B, C)],
        out_specs=(full(B, M), full(B, M), full(B, B), full(B, B)),
        compiler_params=pltpu.CompilerParams(dimension_semantics=("arbitrary",)),
    )(h_audio, a_gamma.reshape(1, Da), a_beta.reshape(1, Da), a_w,
      h_text, t_gamma.reshape(1, Dt), t_beta.reshape(1, Dt), t_w,
      binary)


# --------------------------------------------------------------------------- #
# Kernel B: both triplet heads (cosine-distance margin loss) + in-kernel gather
# --------------------------------------------------------------------------- #
def _triplet_heads_kernel(za_ref, zt_ref, ix_at_ref, ix_ta_ref, o_ref, *, margin):
    za = za_ref[...]                                            # (B, M)
    zt = zt_ref[...]
    B = za.shape[0]

    # Negative gather via one-hot matmul driven by sampled indices (no XLA gather).
    col = jax.lax.broadcasted_iota(jnp.int32, (B, B), 1)
    oh_at = (col == ix_at_ref[...]).astype(jnp.float32)         # selects negative text rows
    oh_ta = (col == ix_ta_ref[...]).astype(jnp.float32)         # selects negative audio rows
    neg_t = jnp.dot(oh_at, zt, preferred_element_type=jnp.float32)   # (B, M)
    neg_a = jnp.dot(oh_ta, za, preferred_element_type=jnp.float32)   # (B, M)

    # Reciprocal L2 norms (rsqrt -> EUP); 1/max(||x||, eps) == rsqrt(max(sumsq, eps^2)).
    def rnorm(x):
        ss = jnp.sum(x * x, axis=-1, keepdims=True)
        return jax.lax.rsqrt(jnp.maximum(ss, COS_EPS * COS_EPS))

    ra, rt = rnorm(za), rnorm(zt)
    # cos(anchor, positive) is identical for both directions -- computed once.
    cos_ap = jnp.sum(za * zt, axis=-1, keepdims=True) * ra * rt
    cos_an_at = jnp.sum(za * neg_t, axis=-1, keepdims=True) * ra * rnorm(neg_t)
    cos_an_ta = jnp.sum(zt * neg_a, axis=-1, keepdims=True) * rt * rnorm(neg_a)

    # TripletMarginWithDistanceLoss with d = 1 - cos:
    #   relu(d_ap - d_an + margin) == relu(cos_an - cos_ap + margin)
    at_rows = jnp.maximum(cos_an_at - cos_ap + margin, 0.0)     # (B, 1)
    ta_rows = jnp.maximum(cos_an_ta - cos_ap + margin, 0.0)     # (B, 1)
    o_ref[...] = jnp.mean(0.5 * (at_rows + ta_rows), axis=0, keepdims=True)   # (1, 1)


def fused_triplet_heads(z_audio, z_text, neg_ix_at, neg_ix_ta, margin):
    B, M = z_audio.shape
    full = lambda *shape: pl.BlockSpec(shape, lambda i: (0,) * len(shape))
    out = pl.pallas_call(
        functools.partial(_triplet_heads_kernel, margin=float(margin)),
        out_shape=jax.ShapeDtypeStruct((1, 1), jnp.float32),
        grid=(1,),
        in_specs=[full(B, M), full(B, M), full(B, 1), full(B, 1)],
        out_specs=full(1, 1),
        compiler_params=pltpu.CompilerParams(dimension_semantics=("arbitrary",)),
    )(z_audio, z_text,
      neg_ix_at.reshape(B, 1).astype(jnp.int32),
      neg_ix_ta.reshape(B, 1).astype(jnp.int32))
    return out[0, 0]


# --------------------------------------------------------------------------- #
# Plain-JAX glue: per-row weighted sampling + full forward
# --------------------------------------------------------------------------- #
def sample_negatives(masked_weights, key):
    # torch `random.choices(..., weights=row)` -> categorical over log-weights.
    positive = masked_weights > 0.0
    logits = jnp.where(positive, jnp.log(jnp.where(positive, masked_weights, 1.0)), -jnp.inf)
    return jax.random.categorical(key, logits, axis=-1).astype(jnp.int32)


def triplet_model_forward(params, binary, audio, text, key, margin):
    # encode_audio: external audio_encoder stubbed as identity over a pre-encoded
    # sequence; take the CLS token.  Text path is the 'glove' branch (already an embedding).
    h_audio = audio[:, 0, :]
    z_audio, z_text, mw_at, mw_ta = fused_embed_and_weights(
        h_audio, params["a_gamma"], params["a_beta"], params["a_w"],
        text, params["t_gamma"], params["t_beta"], params["t_w"], binary)

    k1, k2 = jax.random.split(key)
    neg_ix_at = sample_negatives(mw_at, k1)    # negatives drawn from text rows
    neg_ix_ta = sample_negatives(mw_ta, k2)    # negatives drawn from audio rows

    return fused_triplet_heads(z_audio, z_text, neg_ix_at, neg_ix_ta, margin)


# --------------------------------------------------------------------------- #
if __name__ == "__main__":
    B, S = 8, 4
    AUDIO_DIM, TEXT_DIM, MLP_DIM = 64, 64, 128   # MLP_DIM=128 keeps projector output lane-dense
    NUM_CLS = 16
    MARGIN = 0.4

    root = jax.random.PRNGKey(0)
    k_audio, k_text, k_wa, k_wt, k_sample = jax.random.split(root, 5)

    # Deterministic inputs (audio is the pre-encoded sequence output of the audio encoder)
    audio = jax.random.normal(k_audio, (B, S, AUDIO_DIM), dtype=jnp.float32)
    text = jax.random.normal(k_text, (B, TEXT_DIM), dtype=jnp.float32)       # glove embedding
    binary = jax.nn.one_hot(jnp.arange(B) % NUM_CLS, NUM_CLS, dtype=jnp.float32)

    # Deterministic parameters (LayerNorm: gamma=1, beta=0 as torch init; Linear bias=False)
    params = {
        "a_gamma": jnp.ones((AUDIO_DIM,), jnp.float32),
        "a_beta": jnp.zeros((AUDIO_DIM,), jnp.float32),
        "a_w": jax.random.normal(k_wa, (AUDIO_DIM, MLP_DIM), jnp.float32) / jnp.sqrt(AUDIO_DIM),
        "t_gamma": jnp.ones((TEXT_DIM,), jnp.float32),
        "t_beta": jnp.zeros((TEXT_DIM,), jnp.float32),
        "t_w": jax.random.normal(k_wt, (TEXT_DIM, MLP_DIM), jnp.float32) / jnp.sqrt(TEXT_DIM),
    }

    loss = triplet_model_forward(params, binary, audio, text, k_sample, MARGIN)
    loss = jax.block_until_ready(loss)
    assert loss.shape == () and jnp.isfinite(loss)
    print("KERNEL_OK")
</pallas_src>

<mosaic_0001>
module attributes {stable_mosaic.version = 11 : i64} {
  func.func @_embed_weights_kernel(%arg0: i32, %arg1: memref<8x64xf32, #tpu.memory_space<vmem>>, %arg2: memref<1x64xf32, #tpu.memory_space<vmem>>, %arg3: memref<1x64xf32, #tpu.memory_space<vmem>>, %arg4: memref<64x128xf32, #tpu.memory_space<vmem>>, %arg5: memref<8x64xf32, #tpu.memory_space<vmem>>, %arg6: memref<1x64xf32, #tpu.memory_space<vmem>>, %arg7: memref<1x64xf32, #tpu.memory_space<vmem>>, %arg8: memref<64x128xf32, #tpu.memory_space<vmem>>, %arg9: memref<8x16xf32, #tpu.memory_space<vmem>>, %arg10: memref<8x128xf32, #tpu.memory_space<vmem>>, %arg11: memref<8x128xf32, #tpu.memory_space<vmem>>, %arg12: memref<8x8xf32, #tpu.memory_space<vmem>>, %arg13: memref<8x8xf32, #tpu.memory_space<vmem>>) attributes {dimension_semantics = [#tpu.dimension_semantics<arbitrary>], iteration_bounds = array<i64: 1>, scalar_prefetch = 0 : i64, scratch_operands = 0 : i64, tpu.core_type = #tpu.core_type<tc>, window_params = [{pipeline_mode = #tpu.pipeline_mode<synchronous>, transform_indices = @transform_0, window_bounds = array<i64: 8, 64>}, {pipeline_mode = #tpu.pipeline_mode<synchronous>, transform_indices = @transform_1, window_bounds = array<i64: 1, 64>}, {pipeline_mode = #tpu.pipeline_mode<synchronous>, transform_indices = @transform_2, window_bounds = array<i64: 1, 64>}, {pipeline_mode = #tpu.pipeline_mode<synchronous>, transform_indices = @transform_3, window_bounds = array<i64: 64, 128>}, {pipeline_mode = #tpu.pipeline_mode<synchronous>, transform_indices = @transform_4, window_bounds = array<i64: 8, 64>}, {pipeline_mode = #tpu.pipeline_mode<synchronous>, transform_indices = @transform_5, window_bounds = array<i64: 1, 64>}, {pipeline_mode = #tpu.pipeline_mode<synchronous>, transform_indices = @transform_6, window_bounds = array<i64: 1, 64>}, {pipeline_mode = #tpu.pipeline_mode<synchronous>, transform_indices = @transform_7, window_bounds = array<i64: 64, 128>}, {pipeline_mode = #tpu.pipeline_mode<synchronous>, transform_indices = @transform_8, window_bounds = array<i64: 8, 16>}, {pipeline_mode = #tpu.pipeline_mode<synchronous>, transform_indices = @transform_9, window_bounds = array<i64: 8, 128>}, {pipeline_mode = #tpu.pipeline_mode<synchronous>, transform_indices = @transform_10, window_bounds = array<i64: 8, 128>}, {pipeline_mode = #tpu.pipeline_mode<synchronous>, transform_indices = @transform_11, window_bounds = array<i64: 8, 8>}, {pipeline_mode = #tpu.pipeline_mode<synchronous>, transform_indices = @transform_12, window_bounds = array<i64: 8, 8>}]} {
    %c0 = arith.constant 0 : index
    %c0_0 = arith.constant 0 : index
    %0 = vector.load %arg1[%c0, %c0_0] : memref<8x64xf32, #tpu.memory_space<vmem>>, vector<8x64xf32>
    %cst = arith.constant dense<0.000000e+00> : vector<8xf32>
    %1 = vector.multi_reduction <add>, %0, %cst [1] : vector<8x64xf32> to vector<8xf32>
    %2 = vector.shape_cast %1 : vector<8xf32> to vector<8x1xf32>
    %cst_1 = arith.constant 6.400000e+01 : f32
    %3 = vector.broadcast %cst_1 : f32 to vector<8x1xf32>
    %4 = arith.divf %2, %3 : vector<8x1xf32>
    %5 = vector.broadcast %4 : vector<8x1xf32> to vector<8x64xf32>
    %6 = arith.subf %0, %5 : vector<8x64xf32>
    %7 = arith.mulf %6, %6 : vector<8x64xf32>
    %cst_2 = arith.constant dense<0.000000e+00> : vector<8xf32>
    %8 = vector.multi_reduction <add>, %7, %cst_2 [1] : vector<8x64xf32> to vector<8xf32>
    %9 = vector.shape_cast %8 : vector<8xf32> to vector<8x1xf32>
    %cst_3 = arith.constant 6.400000e+01 : f32
    %10 = vector.broadcast %cst_3 : f32 to vector<8x1xf32>
    %11 = arith.divf %9, %10 : vector<8x1xf32>
    %cst_4 = arith.constant 9.99999974E-6 : f32
    %12 = vector.broadcast %cst_4 : f32 to vector<8x1xf32>
    %13 = arith.addf %11, %12 : vector<8x1xf32>
    %14 = math.rsqrt %13 : vector<8x1xf32>
    %15 = vector.broadcast %14 : vector<8x1xf32> to vector<8x64xf32>
    %16 = arith.mulf %6, %15 : vector<8x64xf32>
    %c0_5 = arith.constant 0 : index
    %c0_6 = arith.constant 0 : index
    %17 = vector.load %arg2[%c0_5, %c0_6] : memref<1x64xf32, #tpu.memory_space<vmem>>, vector<1x64xf32>
    %18 = vector.broadcast %17 : vector<1x64xf32> to vector<8x64xf32>
    %19 = arith.mulf %16, %18 : vector<8x64xf32>
    %c0_7 = arith.constant 0 : index
    %c0_8 = arith.constant 0 : index
    %20 = vector.load %arg3[%c0_7, %c0_8] : memref<1x64xf32, #tpu.memory_space<vmem>>, vector<1x64xf32>
    %21 = vector.broadcast %20 : vector<1x64xf32> to vector<8x64xf32>
    %22 = arith.addf %19, %21 : vector<8x64xf32>
    %c0_9 = arith.constant 0 : index
    %c0_10 = arith.constant 0 : index
    %23 = vector.load %arg4[%c0_9, %c0_10] : memref<64x128xf32, #tpu.memory_space<vmem>>, vector<64x128xf32>
    %cst_11 = arith.constant dense<0.000000e+00> : vector<8x128xf32>
    %24 = tpu.matmul %22, %23, %cst_11 {dimension_numbers = #tpu.dot_dimension_numbers<[1], [0], [0], [1], [0, 0, 1, 1], [], []>} : vector<8x64xf32>, vector<64x128xf32>, vector<8x128xf32> -> vector<8x128xf32>
    %c0_12 = arith.constant 0 : index
    %c0_13 = arith.constant 0 : index
    %25 = vector.load %arg5[%c0_12, %c0_13] : memref<8x64xf32, #tpu.memory_space<vmem>>, vector<8x64xf32>
    %cst_14 = arith.constant dense<0.000000e+00> : vector<8xf32>
    %26 = vector.multi_reduction <add>, %25, %cst_14 [1] : vector<8x64xf32> to vector<8xf32>
    %27 = vector.shape_cast %26 : vector<8xf32> to vector<8x1xf32>
    %cst_15 = arith.constant 6.400000e+01 : f32
    %28 = vector.broadcast %cst_15 : f32 to vector<8x1xf32>
    %29 = arith.divf %27, %28 : vector<8x1xf32>
    %30 = vector.broadcast %29 : vector<8x1xf32> to vector<8x64xf32>
    %31 = arith.subf %25, %30 : vector<8x64xf32>
    %32 = arith.mulf %31, %31 : vector<8x64xf32>
    %cst_16 = arith.constant dense<0.000000e+00> : vector<8xf32>
    %33 = vector.multi_reduction <add>, %32, %cst_16 [1] : vector<8x64xf32> to vector<8xf32>
    %34 = vector.shape_cast %33 : vector<8xf32> to vector<8x1xf32>
    %cst_17 = arith.constant 6.400000e+01 : f32
    %35 = vector.broadcast %cst_17 : f32 to vector<8x1xf32>
    %36 = arith.divf %34, %35 : vector<8x1xf32>
    %cst_18 = arith.constant 9.99999974E-6 : f32
    %37 = vector.broadcast %cst_18 : f32 to vector<8x1xf32>
    %38 = arith.addf %36, %37 : vector<8x1xf32>
    %39 = math.rsqrt %38 : vector<8x1xf32>
    %40 = vector.broadcast %39 : vector<8x1xf32> to vector<8x64xf32>
    %41 = arith.mulf %31, %40 : vector<8x64xf32>
    %c0_19 = arith.constant 0 : index
    %c0_20 = arith.constant 0 : index
    %42 = vector.load %arg6[%c0_19, %c0_20] : memref<1x64xf32, #tpu.memory_space<vmem>>, vector<1x64xf32>
    %43 = vector.broadcast %42 : vector<1x64xf32> to vector<8x64xf32>
    %44 = arith.mulf %41, %43 : vector<8x64xf32>
    %c0_21 = arith.constant 0 : index
    %c0_22 = arith.constant 0 : index
    %45 = vector.load %arg7[%c0_21, %c0_22] : memref<1x64xf32, #tpu.memory_space<vmem>>, vector<1x64xf32>
    %46 = vector.broadcast %45 : vector<1x64xf32> to vector<8x64xf32>
    %47 = arith.addf %44, %46 : vector<8x64xf32>
    %c0_23 = arith.constant 0 : index
    %c0_24 = arith.constant 0 : index
    %48 = vector.load %arg8[%c0_23, %c0_24] : memref<64x128xf32, #tpu.memory_space<vmem>>, vector<64x128xf32>
    %cst_25 = arith.constant dense<0.000000e+00> : vector<8x128xf32>
    %49 = tpu.matmul %47, %48, %cst_25 {dimension_numbers = #tpu.dot_dimension_numbers<[1], [0], [0], [1], [0, 0, 1, 1], [], []>} : vector<8x64xf32>, vector<64x128xf32>, vector<8x128xf32> -> vector<8x128xf32>
    %c0_26 = arith.constant 0 : index
    %c0_27 = arith.constant 0 : index
    %50 = vector.load %arg10[%c0_26, %c0_27] : memref<8x128xf32, #tpu.memory_space<vmem>>, vector<8x128xf32>
    tpu.vector_store %arg10[%c0_26, %c0_27], %24 {strides = array<i32>} : memref<8x128xf32, #tpu.memory_space<vmem>>, vector<8x128xf32>,
    %c0_28 = arith.constant 0 : index
    %c0_29 = arith.constant 0 : index
    %51 = vector.load %arg11[%c0_28, %c0_29] : memref<8x128xf32, #tpu.memory_space<vmem>>, vector<8x128xf32>
    tpu.vector_store %arg11[%c0_28, %c0_29], %49 {strides = array<i32>} : memref<8x128xf32, #tpu.memory_space<vmem>>, vector<8x128xf32>,
    %52 = arith.mulf %24, %24 : vector<8x128xf32>
    %cst_30 = arith.constant dense<0.000000e+00> : vector<8xf32>
    %53 = vector.multi_reduction <add>, %52, %cst_30 [1] : vector<8x128xf32> to vector<8xf32>
    %54 = vector.shape_cast %53 : vector<8xf32> to vector<8x1xf32>
    %cst_31 = arith.constant 1.000000e-24 : f32
    %55 = vector.broadcast %cst_31 : f32 to vector<8x1xf32>
    %56 = arith.maximumf %54, %55 : vector<8x1xf32>
    %57 = math.rsqrt %56 : vector<8x1xf32>
    %58 = vector.broadcast %57 : vector<8x1xf32> to vector<8x128xf32>
    %59 = arith.mulf %24, %58 : vector<8x128xf32>
    %60 = arith.mulf %49, %49 : vector<8x128xf32>
    %cst_32 = arith.constant dense<0.000000e+00> : vector<8xf32>
    %61 = vector.multi_reduction <add>, %60, %cst_32 [1] : vector<8x128xf32> to vector<8xf32>
    %62 = vector.shape_cast %61 : vector<8xf32> to vector<8x1xf32>
    %cst_33 = arith.constant 1.000000e-24 : f32
    %63 = vector.broadcast %cst_33 : f32 to vector<8x1xf32>
    %64 = arith.maximumf %62, %63 : vector<8x1xf32>
    %65 = math.rsqrt %64 : vector<8x1xf32>
    %66 = vector.broadcast %65 : vector<8x1xf32> to vector<8x128xf32>
    %67 = arith.mulf %49, %66 : vector<8x128xf32>
    %cst_34 = arith.constant dense<0.000000e+00> : vector<8x8xf32>
    %68 = tpu.matmul %59, %67, %cst_34 {dimension_numbers = #tpu.dot_dimension_numbers<[1], [1], [0], [0], [0, 0, 1, 0], [], []>} : vector<8x128xf32>, vector<8x128xf32>, vector<8x8xf32> -> vector<8x8xf32>
    %cst_35 = arith.constant dense<0.000000e+00> : vector<8x8xf32>
    %69 = tpu.matmul %67, %59, %cst_35 {dimension_numbers = #tpu.dot_dimension_numbers<[1], [1], [0], [0], [0, 0, 1, 0], [], []>} : vector<8x128xf32>, vector<8x128xf32>, vector<8x8xf32> -> vector<8x8xf32>
    %c0_36 = arith.constant 0 : index
    %c0_37 = arith.constant 0 : index
    %70 = vector.load %arg9[%c0_36, %c0_37] : memref<8x16xf32, #tpu.memory_space<vmem>>, vector<8x16xf32>
    %cst_38 = arith.constant dense<0.000000e+00> : vector<8x8xf32>
    %71 = tpu.matmul %70, %70, %cst_38 {dimension_numbers = #tpu.dot_dimension_numbers<[1], [1], [0], [0], [0, 0, 1, 0], [], []>} : vector<8x16xf32>, vector<8x16xf32>, vector<8x8xf32> -> vector<8x8xf32>
    %cst_39 = arith.constant dense<0.000000e+00> : vector<8xf32>
    %72 = vector.multi_reduction <add>, %70, %cst_39 [1] : vector<8x16xf32> to vector<8xf32>
    %73 = vector.shape_cast %72 : vector<8xf32> to vector<8x1xf32>
    %74 = vector.broadcast %73 : vector<8x1xf32> to vector<8x8xf32>
    %75 = arith.subf %74, %71 : vector<8x8xf32>
    %cst_40 = arith.constant 0.000000e+00 : f32
    %76 = vector.broadcast %cst_40 : f32 to vector<8x8xf32>
    %77 = arith.cmpf ogt, %75, %76 : vector<8x8xf32>
    %cst_41 = arith.constant 0.000000e+00 : f32
    %78 = vector.broadcast %cst_41 : f32 to vector<8x8xf32>
    %79 = arith.cmpf ogt, %75, %78 : vector<8x8xf32>
    %cst_42 = arith.constant 1.000000e+00 : f32
    %80 = vector.broadcast %cst_42 : f32 to vector<8x8xf32>
    %81 = arith.select %79, %75, %80 : vector<8x8xi1>, vector<8x8xf32>
    %cst_43 = arith.constant 1.000000e+00 : f32
    %82 = vector.broadcast %cst_43 : f32 to vector<8x8xf32>
    %83 = arith.divf %82, %81 : vector<8x8xf32>
    %cst_44 = arith.constant 0.000000e+00 : f32
    %84 = vector.broadcast %cst_44 : f32 to vector<8x8xf32>
    %85 = arith.select %77, %83, %84 : vector<8x8xi1>, vector<8x8xf32>
    %cst_45 = arith.constant 1.000000e+00 : f32
    %86 = vector.broadcast %cst_45 : f32 to vector<8x8xf32>
    %87 = arith.addf %68, %86 : vector<8x8xf32>
    %cst_46 = arith.constant 5.000000e-01 : f32
    %88 = vector.broadcast %cst_46 : f32 to vector<8x8xf32>
    %89 = arith.mulf %87, %88 : vector<8x8xf32>
    %90 = arith.mulf %89, %85 : vector<8x8xf32>
    %c0_47 = arith.constant 0 : index
    %c0_48 = arith.constant 0 : index
    %91 = vector.load %arg12[%c0_47, %c0_48] : memref<8x8xf32, #tpu.memory_space<vmem>>, vector<8x8xf32>
    tpu.vector_store %arg12[%c0_47, %c0_48], %90 {strides = array<i32>} : memref<8x8xf32, #tpu.memory_space<vmem>>, vector<8x8xf32>,
    %cst_49 = arith.constant 1.000000e+00 : f32
    %92 = vector.broadcast %cst_49 : f32 to vector<8x8xf32>
    %93 = arith.addf %69, %92 : vector<8x8xf32>
    %cst_50 = arith.constant 5.000000e-01 : f32
    %94 = vector.broadcast %cst_50 : f32 to vector<8x8xf32>
    %95 = arith.mulf %93, %94 : vector<8x8xf32>
    %96 = arith.mulf %95, %85 : vector<8x8xf32>
    %c0_51 = arith.constant 0 : index
    %c0_52 = arith.constant 0 : index
    %97 = vector.load %arg13[%c0_51, %c0_52] : memref<8x8xf32, #tpu.memory_space<vmem>>, vector<8x8xf32>
    tpu.vector_store %arg13[%c0_51, %c0_52], %96 {strides = array<i32>} : memref<8x8xf32, #tpu.memory_space<vmem>>, vector<8x8xf32>,
    return
  }
  func.func @transform_0(%arg0: i32) -> (i32, i32) {
    %c0_i32 = arith.constant 0 : i32
    %c0_i32_0 = arith.constant 0 : i32
    %c0_i32_1 = arith.constant 0 : i32
    return %c0_i32, %c0_i32_0 : i32, i32
  }
  func.func @transform_1(%arg0: i32) -> (i32, i32) {
    %c0_i32 = arith.constant 0 : i32
    %c0_i32_0 = arith.constant 0 : i32
    %c0_i32_1 = arith.constant 0 : i32
    return %c0_i32, %c0_i32_0 : i32, i32
  }
  func.func @transform_2(%arg0: i32) -> (i32, i32) {
    %c0_i32 = arith.constant 0 : i32
    %c0_i32_0 = arith.constant 0 : i32
    %c0_i32_1 = arith.constant 0 : i32
    return %c0_i32, %c0_i32_0 : i32, i32
  }
  func.func @transform_3(%arg0: i32) -> (i32, i32) {
    %c0_i32 = arith.constant 0 : i32
    %c0_i32_0 = arith.constant 0 : i32
    %c0_i32_1 = arith.constant 0 : i32
    return %c0_i32, %c0_i32_0 : i32, i32
  }
  func.func @transform_4(%arg0: i32) -> (i32, i32) {
    %c0_i32 = arith.constant 0 : i32
    %c0_i32_0 = arith.constant 0 : i32
    %c0_i32_1 = arith.constant 0 : i32
    return %c0_i32, %c0_i32_0 : i32, i32
  }
  func.func @transform_5(%arg0: i32) -> (i32, i32) {
    %c0_i32 = arith.constant 0 : i32
    %c0_i32_0 = arith.constant 0 : i32
    %c0_i32_1 = arith.constant 0 : i32
    return %c0_i32, %c0_i32_0 : i32, i32
  }
  func.func @transform_6(%arg0: i32) -> (i32, i32) {
    %c0_i32 = arith.constant 0 : i32
    %c0_i32_0 = arith.constant 0 : i32
    %c0_i32_1 = arith.constant 0 : i32
    return %c0_i32, %c0_i32_0 : i32, i32
  }
  func.func @transform_7(%arg0: i32) -> (i32, i32) {
    %c0_i32 = arith.constant 0 : i32
    %c0_i32_0 = arith.constant 0 : i32
    %c0_i32_1 = arith.constant 0 : i32
    return %c0_i32, %c0_i32_0 : i32, i32
  }
  func.func @transform_8(%arg0: i32) -> (i32, i32) {
    %c0_i32 = arith.constant 0 : i32
    %c0_i32_0 = arith.constant 0 : i32
    %c0_i32_1 = arith.constant 0 : i32
    return %c0_i32, %c0_i32_0 : i32, i32
  }
  func.func @transform_9(%arg0: i32) -> (i32, i32) {
    %c0_i32 = arith.constant 0 : i32
    %c0_i32_0 = arith.constant 0 : i32
    %c0_i32_1 = arith.constant 0 : i32
    return %c0_i32, %c0_i32_0 : i32, i32
  }
  func.func @transform_10(%arg0: i32) -> (i32, i32) {
    %c0_i32 = arith.constant 0 : i32
    %c0_i32_0 = arith.constant 0 : i32
    %c0_i32_1 = arith.constant 0 : i32
    return %c0_i32, %c0_i32_0 : i32, i32
  }
  func.func @transform_11(%arg0: i32) -> (i32, i32) {
    %c0_i32 = arith.constant 0 : i32
    %c0_i32_0 = arith.constant 0 : i32
    %c0_i32_1 = arith.constant 0 : i32
    return %c0_i32, %c0_i32_0 : i32, i32
  }
  func.func @transform_12(%arg0: i32) -> (i32, i32) {
    %c0_i32 = arith.constant 0 : i32
    %c0_i32_0 = arith.constant 0 : i32
    %c0_i32_1 = arith.constant 0 : i32
    return %c0_i32, %c0_i32_0 : i32, i32
  }
}

</mosaic_0001>

<llo_original>
// kernel: tpu_custom_call.1
$region0: #{tpu_custom_call.1}
  #allocation0 [shape = 'u32[]', space=smem, size = 0x4, offset = 0x4, fixed_abs, tag = 'smem constant byte address 0x4 - core index']
  #allocation1 [shape = 'u32[144,128]{1,0:T(1,128)}', space=vmem, size = 0x12000, scoped, tag = 'internal scratch']
  %s0 = inlined_call_operand.hbm [shape: f32[8,64], index: 0, kind: input, shape index: {}]
  %s1 = inlined_call_operand.vmem [shape: f32[1,64], index: 1, kind: input, shape index: {}]
  %s2 = inlined_call_operand.vmem [shape: f32[1,64], index: 2, kind: input, shape index: {}]
  %s3 = inlined_call_operand.hbm [shape: f32[64,128], index: 3, kind: input, shape index: {}]
  %s4 = inlined_call_operand.vmem [shape: f32[8,64], index: 4, kind: input, shape index: {}]
  %s5 = inlined_call_operand.hbm [shape: f32[1,64], index: 5, kind: input, shape index: {}]
  %s6 = inlined_call_operand.vmem [shape: f32[1,64], index: 6, kind: input, shape index: {}]
  %s7 = inlined_call_operand.hbm [shape: f32[64,128], index: 7, kind: input, shape index: {}]
  %s8 = inlined_call_operand.vmem [shape: f32[8,16], index: 8, kind: input, shape index: {}]
  %s9 = inlined_call_operand.hbm [shape: f32[8,128], index: 9, kind: output, shape index: {0}]
  %s10 = inlined_call_operand.hbm [shape: f32[8,128], index: 10, kind: output, shape index: {1}]
  %s11 = inlined_call_operand.hbm [shape: f32[8,8], index: 11, kind: output, shape index: {2}]
  %s12 = inlined_call_operand.hbm [shape: f32[8,8], index: 12, kind: output, shape index: {3}]
  %13 = xla_tuple %s9, %s10, %s11, %s12
  %s14 = sld [smem:[#allocation0]]
  $region86: #{tpu_custom_call.1} parent=0
    _
  %s16 = ssub.s32 1, %s14
  %s17 = scalar_select 0, %s16, %s14
  $region1: #{tpu_custom_call.1} parent=0
    #allocation2 [shape = 'u8[4096]{0}', space=vmem, size = 0x1000, scoped, tag = 'input window, operand 0, single buffered']
    #allocation3 [shape = 's32[1]{0}', space=sflag, size = 0x4, scoped, tag = 'scoped memory for tpu_custom_call.1']
    #allocation4 [shape = 's32[1]{0}', space=sflag, size = 0x4, scoped, tag = 'scoped memory for tpu_custom_call.1']
    #allocation5 [shape = 'u8[32768]{0}', space=vmem, size = 0x8000, scoped, tag = 'input window, operand 3, single buffered']
    #allocation6 [shape = 's32[1]{0}', space=sflag, size = 0x4, scoped, tag = 'scoped memory for tpu_custom_call.1']
    #allocation7 [shape = 'u8[512]{0}', space=vmem, size = 0x400, scoped, tag = 'input window, operand 5, single buffered']
    #allocation8 [shape = 'u8[32768]{0}', space=vmem, size = 0x8000, scoped, tag = 'input window, operand 7, single buffered']
    #allocation9 [shape = 's32[1]{0}', space=sflag, size = 0x4, scoped, tag = 'scoped memory for tpu_custom_call.1']
    #allocation10 [shape = 'u8[4096]{0}', space=vmem, size = 0x1000, scoped, tag = 'output window, operand 0, single buffered']
    #allocation11 [shape = 'u8[4096]{0}', space=vmem, size = 0x1000, scoped, tag = 'output window, operand 1, single buffered']
    #allocation12 [shape = 's32[1]{0}', space=sflag, size = 0x4, scoped, tag = 'scoped memory for tpu_custom_call.1']
    #allocation13 [shape = 'u8[4096]{0}', space=vmem, size = 0x1000, scoped, tag = 'output window, operand 2, single buffered']
    #allocation14 [shape = 'u8[4096]{0}', space=vmem, size = 0x1000, scoped, tag = 'output window, operand 3, single buffered']
    #allocation15 [shape = 's32[1]{0}', space=sflag, size = 0x4, scoped, tag = 'scoped memory for tpu_custom_call.1']
    %18 = vsyncpa [#allocation3], 0
    %19 = vsyncpa [#allocation6], 0
    %20 = vsyncpa [#allocation9], 0
    %21 = vsyncpa [#allocation4], 0
    %22 = vsyncpa [#allocation12], 0
    %23 = vsyncpa [#allocation15], 0
    // Predicated region
    $region2: #{tpu_custom_call.1} parent=1 // pred_check
      _
    $region3: #{tpu_custom_call.1} parent=1 // pred_check_branch
      %25 = sbr.rel (0) target = $region5
    $region4: #{tpu_custom_call.1} parent=1 // pred_region
      %s27 = ssub.s32 128, 128
      %28 = vsyncadd [#allocation3], %s27
      %s30 = sshll.u32 [#allocation2], 4
      %s31 = int_to_ptr.vmem [resolvable:$true] %s30
      %33 = dma.hbm_to_vmem [thread:$0]  %s0, 128, %s31, [#allocation3]
    $region5: #{tpu_custom_call.1} parent=1 // pred_fallthru
      _
    // Predicated region
    $region6: #{tpu_custom_call.1} parent=1 // pred_check
      _
    $region7: #{tpu_custom_call.1} parent=1 // pred_check_branch
      %35 = sbr.rel (0) target = $region9
    $region8: #{tpu_custom_call.1} parent=1 // pred_region
      _
    $region9: #{tpu_custom_call.1} parent=1 // pred_fallthru
      _
    // Predicated region
    $region10: #{tpu_custom_call.1} parent=1 // pred_check
      _
    $region11: #{tpu_custom_call.1} parent=1 // pred_check_branch
      %37 = sbr.rel (0) target = $region13
    $region12: #{tpu_custom_call.1} parent=1 // pred_region
      _
    $region13: #{tpu_custom_call.1} parent=1 // pred_fallthru
      _
    // Predicated region
    $region14: #{tpu_custom_call.1} parent=1 // pred_check
      _
    $region15: #{tpu_custom_call.1} parent=1 // pred_check_branch
      %39 = sbr.rel (0) target = $region17
    $region16: #{tpu_custom_call.1} parent=1 // pred_region
      %s41 = ssub.s32 1024, 1024
      %42 = vsyncadd [#allocation6], %s41
      %s43 = sshll.u32 [#allocation5], 4
      %s44 = int_to_ptr.vmem [resolvable:$true] %s43
      %49 = dma.hbm_to_vmem [thread:$0]  %s3, 1024, %s44, [#allocation6], 128, 128, 8
    $region17: #{tpu_custom_call.1} parent=1 // pred_fallthru
      _
    // Predicated region
    $region18: #{tpu_custom_call.1} parent=1 // pred_check
      _
    $region19: #{tpu_custom_call.1} parent=1 // pred_check_branch
      %51 = sbr.rel (0) target = $region21
    $region20: #{tpu_custom_call.1} parent=1 // pred_region
      _
    $region21: #{tpu_custom_call.1} parent=1 // pred_fallthru
      _
    // Predicated region
    $region22: #{tpu_custom_call.1} parent=1 // pred_check
      _
    $region23: #{tpu_custom_call.1} parent=1 // pred_check_branch
      %53 = sbr.rel (0) target = $region25
    $region24: #{tpu_custom_call.1} parent=1 // pred_region
      %s55 = ssub.s32 16, 16
      %56 = vsyncadd [#allocation6], %s55
      %s58 = sshll.u32 [#allocation7], 4
      %s59 = int_to_ptr.vmem [resolvable:$true] %s58
      %61 = dma.hbm_to_vmem [thread:$0]  %s5, 16, %s59, [#allocation6]
    $region25: #{tpu_custom_call.1} parent=1 // pred_fallthru
      _
    // Predicated region
    $region26: #{tpu_custom_call.1} parent=1 // pred_check
      _
    $region27: #{tpu_custom_call.1} parent=1 // pred_check_branch
      %63 = sbr.rel (0) target = $region29
    $region28: #{tpu_custom_call.1} parent=1 // pred_region
      _
    $region29: #{tpu_custom_call.1} parent=1 // pred_fallthru
      _
    // Predicated region
    $region30: #{tpu_custom_call.1} parent=1 // pred_check
      _
    $region31: #{tpu_custom_call.1} parent=1 // pred_check_branch
      %65 = sbr.rel (0) target = $region33
    $region32: #{tpu_custom_call.1} parent=1 // pred_region
      %s67 = ssub.s32 1024, 1024
      %68 = vsyncadd [#allocation9], %s67
      %s69 = sshll.u32 [#allocation8], 4
      %s70 = int_to_ptr.vmem [resolvable:$true] %s69
      %75 = dma.hbm_to_vmem [thread:$0]  %s7, 1024, %s70, [#allocation9], 128, 128, 8
    $region33: #{tpu_custom_call.1} parent=1 // pred_fallthru
      _
    // Predicated region
    $region34: #{tpu_custom_call.1} parent=1 // pred_check
      _
    $region35: #{tpu_custom_call.1} parent=1 // pred_check_branch
      %77 = sbr.rel (0) target = $region37
    $region36: #{tpu_custom_call.1} parent=1 // pred_region
      _
    $region37: #{tpu_custom_call.1} parent=1 // pred_fallthru
      _
    // Predicated region
    $region38: #{tpu_custom_call.1} parent=1 // pred_check
      _
    $region39: #{tpu_custom_call.1} parent=1 // pred_check_branch
      %79 = sbr.rel (0) target = $region41
    $region40: #{tpu_custom_call.1} parent=1 // pred_region
      %80 = dma.done [#allocation3], 128
    $region41: #{tpu_custom_call.1} parent=1 // pred_fallthru
      _
    // Predicated region
    $region42: #{tpu_custom_call.1} parent=1 // pred_check
      _
    $region43: #{tpu_custom_call.1} parent=1 // pred_check_branch
      %82 = sbr.rel (0) target = $region45
    $region44: #{tpu_custom_call.1} parent=1 // pred_region
      %83 = dma.done [#allocation6], 1024
    $region45: #{tpu_custom_call.1} parent=1 // pred_fallthru
      _
    // Predicated region
    $region46: #{tpu_custom_call.1} parent=1 // pred_check
      _
    $region47: #{tpu_custom_call.1} parent=1 // pred_check_branch
      %85 = sbr.rel (0) target = $region49
    $region48: #{tpu_custom_call.1} parent=1 // pred_region
      %86 = dma.done [#allocation6], 16
    $region49: #{tpu_custom_call.1} parent=1 // pred_fallthru
      _
    // Predicated region
    $region50: #{tpu_custom_call.1} parent=1 // pred_check
      _
    $region51: #{tpu_custom_call.1} parent=1 // pred_check_branch
      %88 = sbr.rel (0) target = $region53
    $region52: #{tpu_custom_call.1} parent=1 // pred_region
      %89 = dma.done [#allocation9], 1024
    $region53: #{tpu_custom_call.1} parent=1 // pred_fallthru
      _
    %v90 = vld [vmem:[#allocation2] sm:$0xff]
    %vm91 = vcmask 523264
    %v92 = vsel %vm91, %v90, 0.0
    %93 = vadd.xlane.f32.xlu0 %v92
    %v94 = vpop.xlane.xlu0 %93
    %v95 = vrcp.pop 64.0
    %v96 = vmul.f32 %v94, %v95
    %v97 = vsub.f32 %v90, %v96
    %v98 = vmul.f32 %v97, %v97
    %v99 = vsel %vm91, %v98, 0.0
    %100 = vadd.xlane.f32.xlu0 %v99
    %v101 = vpop.xlane.xlu0 %100
    %v102 = vmul.f32 %v101, %v95
    %v103 = vadd.f32 %v102, 1e-05
    %v104 = vrsqrt.pop %v103
    %v105 = vmul.f32 %v97, %v104
    %v106 = vld [vmem:[%s1] sm:$0x1]
    %v108 = vlaneseq
    %v109 = vshrl.u32 %v108, 7
    %v110 = vsub.s32 0, %v109
    %v111 = vrot.slane %v106, %v110
    %v113 = vmul.f32 %v105, %v111
    %v114 = vld [vmem:[%s2] sm:$0x1]
    %v116 = vlaneseq
    %v117 = vshrl.u32 %v116, 7
    %v118 = vsub.s32 0, %v117
    %v119 = vrot.slane %v114, %v118
    %v121 = vadd.f32 %v113, %v119
    %v122 = vld [vmem:[#allocation5] sm:$0xff]
    %v123 = vld [vmem:[#allocation5 + $0x8] sm:$0xff]
    %v124 = vld [vmem:[#allocation5 + $0x10] sm:$0xff]
    %v125 = vld [vmem:[#allocation5 + $0x18] sm:$0xff]
    %v126 = vld [vmem:[#allocation5 + $0x20] sm:$0xff]
    %v127 = vld [vmem:[#allocation5 + $0x28] sm:$0xff]
    %v128 = vld [vmem:[#allocation5 + $0x30] sm:$0xff]
    %v129 = vld [vmem:[#allocation5 + $0x38] sm:$0xff]
    %v131 = vsel %vm91, %v121, 0
    %133 = vmatprep.subr.mxu0 0.0
    %134 = vmatpush1.msra.mxu0 %v122
    %135 = vmatprep.subr.mxu0 0.0
    %136 = vmatpush1.msra.mxu0 %v123
    %137 = vmatprep.subr.mxu0 0.0
    %138 = vmatpush1.msra.mxu0 %v124
    %139 = vmatprep.subr.mxu0 0.0
    %140 = vmatpush1.msra.mxu0 %v125
    %141 = vmatprep.subr.mxu0 0.0
    %142 = vmatpush1.msra.mxu0 %v126
    %143 = vmatprep.subr.mxu0 0.0
    %144 = vmatpush1.msra.mxu0 %v127
    %145 = vmatprep.subr.mxu0 0.0
    %146 = vmatpush1.msra.mxu0 %v128
    %147 = vmatprep.subr.mxu0 0.0
    %148 = vmatpush1.msra.mxu0 %v129
    %149 = vmatprep.subr.mxu0 0.0
    %150 = vmatpush1.msra.mxu0 0.0
    %151 = vmatprep.subr.mxu0 0.0
    %152 = vmatpush1.msra.mxu0 0.0
    %153 = vmatprep.subr.mxu0 0.0
    %154 = vmatpush1.msra.mxu0 0.0
    %155 = vmatprep.subr.mxu0 0.0
    %156 = vmatpush1.msra.mxu0 0.0
    %157 = vmatprep.subr.mxu0 0.0
    %158 = vmatpush1.msra.mxu0 0.0
    %159 = vmatprep.subr.mxu0 0.0
    %160 = vmatpush1.msra.mxu0 0.0
    %161 = vmatprep.subr.mxu0 0.0
    %162 = vmatpush1.msra.mxu0 0.0
    %163 = vmatprep.subr.mxu0 0.0
    %164 = vmatpush1.msra.mxu0 0.0
    %165 = vmatprep.subr.mxu0 0.0
    %166 = vmatpush1.msra.mxu0 0.0
    %167 = vmatprep.subr.mxu0 0.0
    %168 = vmatpush1.msra.mxu0 0.0
    %169 = vmatprep.subr.mxu0 0.0
    %170 = vmatpush1.msra.mxu0 0.0
    %171 = vmatprep.subr.mxu0 0.0
    %172 = vmatpush1.msra.mxu0 0.0
    %173 = vmatprep.subr.mxu0 0.0
    %174 = vmatpush1.msra.mxu0 0.0
    %175 = vmatprep.subr.mxu0 0.0
    %176 = vmatpush1.msra.mxu0 0.0
    %177 = vmatprep.subr.mxu0 0.0
    %178 = vmatpush1.msra.mxu0 0.0
    %179 = vmatprep.subr.mxu0 0.0
    %180 = vmatpush1.msra.mxu0 0.0
    %181 = vmatprep.subr.mxu0 0.0
    %182 = vmatpush1.msra.mxu0 0.0
    %183 = vmatprep.subr.mxu0 0.0
    %184 = vmatpush1.msra.mxu0 0.0
    %185 = vmatprep.subr.mxu0 0.0
    %186 = vmatpush1.msra.mxu0 0.0
    %187 = vmatprep.subr.mxu0 0.0
    %188 = vmatpush1.msra.mxu0 0.0
    %189 = vmatprep.subr.mxu0 0.0
    %190 = vmatpush1.msra.mxu0 0.0
    %191 = vmatprep.subr.mxu0 0.0
    %192 = vmatpush1.msra.mxu0 0.0
    %193 = vmatprep.subr.mxu0 0.0
    %194 = vmatpush1.msra.mxu0 0.0
    %195 = vmatprep.subr.mxu0 0.0
    %196 = vmatpush1.msra.mxu0 0.0
    %197 = vmatprep.mubr.f32.mxu0 0.0
    %198 = vmatmul.mubr.f32.gmra.mrb[0].mxu0 %v131
    %v199 = vpop.f32.mrb[0].mxu0
    %v200 = vadd.f32 0.0, %v199
    %v201 = vpop.f32.mrb[0].mxu0
    %202 = vdwg.mxu0
    %v203 = vld [vmem:[%s4] sm:$0xff]
    %v204 = vsel %vm91, %v203, 0.0
    %205 = vadd.xlane.f32.xlu0 %v204
    %v206 = vpop.xlane.xlu0 %205
    %v207 = vmul.f32 %v206, %v95
    %v208 = vsub.f32 %v203, %v207
    %v209 = vmul.f32 %v208, %v208
    %v210 = vsel %vm91, %v209, 0.0
    %211 = vadd.xlane.f32.xlu0 %v210
    %v212 = vpop.xlane.xlu0 %211
    %v213 = vmul.f32 %v212, %v95
    %v214 = vadd.f32 %v213, 1e-05
    %v215 = vrsqrt.pop %v214
    %v216 = vmul.f32 %v208, %v215
    %v217 = vld [vmem:[#allocation7] sm:$0x1]
    %v219 = vlaneseq
    %v220 = vshrl.u32 %v219, 7
    %v221 = vsub.s32 0, %v220
    %v222 = vrot.slane %v217, %v221
    %v224 = vmul.f32 %v216, %v222
    %v225 = vld [vmem:[%s6] sm:$0x1]
    %v227 = vlaneseq
    %v228 = vshrl.u32 %v227, 7
    %v229 = vsub.s32 0, %v228
    %v230 = vrot.slane %v225, %v229
    %v232 = vadd.f32 %v224, %v230
    %v233 = vld [vmem:[#allocation8] sm:$0xff]
    %v234 = vld [vmem:[#allocation8 + $0x8] sm:$0xff]
    %v235 = vld [vmem:[#allocation8 + $0x10] sm:$0xff]
    %v236 = vld [vmem:[#allocation8 + $0x18] sm:$0xff]
    %v237 = vld [vmem:[#allocation8 + $0x20] sm:$0xff]
    %v238 = vld [vmem:[#allocation8 + $0x28] sm:$0xff]
    %v239 = vld [vmem:[#allocation8 + $0x30] sm:$0xff]
    %v240 = vld [vmem:[#allocation8 + $0x38] sm:$0xff]
    %v242 = vsel %vm91, %v232, 0
    %244 = vmatprep.subr.mxu0 0.0
    %245 = vmatpush1.msra.mxu0 %v233
    %246 = vmatprep.subr.mxu0 0.0
    %247 = vmatpush1.msra.mxu0 %v234
    %248 = vmatprep.subr.mxu0 0.0
    %249 = vmatpush1.msra.mxu0 %v235
    %250 = vmatprep.subr.mxu0 0.0
    %251 = vmatpush1.msra.mxu0 %v236
    %252 = vmatprep.subr.mxu0 0.0
    %253 = vmatpush1.msra.mxu0 %v237
    %254 = vmatprep.subr.mxu0 0.0
    %255 = vmatpush1.msra.mxu0 %v238
    %256 = vmatprep.subr.mxu0 0.0
    %257 = vmatpush1.msra.mxu0 %v239
    %258 = vmatprep.subr.mxu0 0.0
    %259 = vmatpush1.msra.mxu0 %v240
    %260 = vmatprep.subr.mxu0 0.0
    %261 = vmatpush1.msra.mxu0 0.0
    %262 = vmatprep.subr.mxu0 0.0
    %263 = vmatpush1.msra.mxu0 0.0
    %264 = vmatprep.subr.mxu0 0.0
    %265 = vmatpush1.msra.mxu0 0.0
    %266 = vmatprep.subr.mxu0 0.0
    %267 = vmatpush1.msra.mxu0 0.0
    %268 = vmatprep.subr.mxu0 0.0
    %269 = vmatpush1.msra.mxu0 0.0
    %270 = vmatprep.subr.mxu0 0.0
    %271 = vmatpush1.msra.mxu0 0.0
    %272 = vmatprep.subr.mxu0 0.0
    %273 = vmatpush1.msra.mxu0 0.0
    %274 = vmatprep.subr.mxu0 0.0
    %275 = vmatpush1.msra.mxu0 0.0
    %276 = vmatprep.subr.mxu0 0.0
    %277 = vmatpush1.msra.mxu0 0.0
    %278 = vmatprep.subr.mxu0 0.0
    %279 = vmatpush1.msra.mxu0 0.0
    %280 = vmatprep.subr.mxu0 0.0
    %281 = vmatpush1.msra.mxu0 0.0
    %282 = vmatprep.subr.mxu0 0.0
    %283 = vmatpush1.msra.mxu0 0.0
    %284 = vmatprep.subr.mxu0 0.0
    %285 = vmatpush1.msra.mxu0 0.0
    %286 = vmatprep.subr.mxu0 0.0
    %287 = vmatpush1.msra.mxu0 0.0
    %288 = vmatprep.subr.mxu0 0.0
    %289 = vmatpush1.msra.mxu0 0.0
    %290 = vmatprep.subr.mxu0 0.0
    %291 = vmatpush1.msra.mxu0 0.0
    %292 = vmatprep.subr.mxu0 0.0
    %293 = vmatpush1.msra.mxu0 0.0
    %294 = vmatprep.subr.mxu0 0.0
    %295 = vmatpush1.msra.mxu0 0.0
    %296 = vmatprep.subr.mxu0 0.0
    %297 = vmatpush1.msra.mxu0 0.0
    %298 = vmatprep.subr.mxu0 0.0
    %299 = vmatpush1.msra.mxu0 0.0
    %300 = vmatprep.subr.mxu0 0.0
    %301 = vmatpush1.msra.mxu0 0.0
    %302 = vmatprep.subr.mxu0 0.0
    %303 = vmatpush1.msra.mxu0 0.0
    %304 = vmatprep.subr.mxu0 0.0
    %305 = vmatpush1.msra.mxu0 0.0
    %306 = vmatprep.subr.mxu0 0.0
    %307 = vmatpush1.msra.mxu0 0.0
    %308 = vmatprep.mubr.f32.mxu0 0.0
    %309 = vmatmul.mubr.f32.gmra.mrb[0].mxu0 %v242
    %v310 = vpop.f32.mrb[0].mxu0
    %v311 = vadd.f32 0.0, %v310
    %v312 = vpop.f32.mrb[0].mxu0
    %313 = vdwg.mxu0
    %314 = vst [vmem:[#allocation10] sm:$0xff] %v200
    %315 = vst [vmem:[#allocation11] sm:$0xff] %v311
    %v316 = vmul.f32 %v200, %v200
    %317 = vadd.xlane.f32.xlu0 %v316
    %v318 = vpop.xlane.xlu0 %317
    %v319 = vmax.f32 %v318, 1e-24
    %v320 = vrsqrt.pop %v319
    %v321 = vmul.f32 %v200, %v320
    %v322 = vmul.f32 %v311, %v311
    %323 = vadd.xlane.f32.xlu0 %v322
    %v324 = vpop.xlane.xlu0 %323
    %v325 = vmax.f32 %v324, 1e-24
    %v326 = vrsqrt.pop %v325
    %v327 = vmul.f32 %v311, %v326
    %v328 = vld [vmem:[%s8] sm:$0xff]
    %vm329 = vcmask 130048
    %v331 = vsel %vm329, %v328, 0
    %333 = vmatprep.subr.mxu0 0.0
    %334 = vmatpush1.xpose.msra.mxu0 %v331
    %335 = vmatprep.subr.mxu0 0.0
    %336 = vmatpush1.xpose.msra.mxu0 0.0
    %337 = vmatprep.subr.mxu0 0.0
    %338 = vmatpush1.xpose.msra.mxu0 0.0
    %339 = vmatprep.subr.mxu0 0.0
    %340 = vmatpush1.xpose.msra.mxu0 0.0
    %341 = vmatprep.subr.mxu0 0.0
    %342 = vmatpush1.xpose.msra.mxu0 0.0
    %343 = vmatprep.subr.mxu0 0.0
    %344 = vmatpush1.xpose.msra.mxu0 0.0
    %345 = vmatprep.subr.mxu0 0.0
    %346 = vmatpush1.xpose.msra.mxu0 0.0
    %347 = vmatprep.subr.mxu0 0.0
    %348 = vmatpush1.xpose.msra.mxu0 0.0
    %349 = vmatprep.subr.mxu0 0.0
    %350 = vmatpush1.xpose.msra.mxu0 0.0
    %351 = vmatprep.subr.mxu0 0.0
    %352 = vmatpush1.xpose.msra.mxu0 0.0
    %353 = vmatprep.subr.mxu0 0.0
    %354 = vmatpush1.xpose.msra.mxu0 0.0
    %355 = vmatprep.subr.mxu0 0.0
    %356 = vmatpush1.xpose.msra.mxu0 0.0
    %357 = vmatprep.subr.mxu0 0.0
    %358 = vmatpush1.xpose.msra.mxu0 0.0
    %359 = vmatprep.subr.mxu0 0.0
    %360 = vmatpush1.xpose.msra.mxu0 0.0
    %361 = vmatprep.subr.mxu0 0.0
    %362 = vmatpush1.xpose.msra.mxu0 0.0
    %363 = vmatprep.subr.mxu0 0.0
    %364 = vmatpush1.xpose.msra.mxu0 0.0
    %365 = vmatprep.subr.mxu0 0.0
    %366 = vmatpush1.xpose.msra.mxu0 0.0
    %367 = vmatprep.subr.mxu0 0.0
    %368 = vmatpush1.xpose.msra.mxu0 0.0
    %369 = vmatprep.subr.mxu0 0.0
    %370 = vmatpush1.xpose.msra.mxu0 0.0
    %371 = vmatprep.subr.mxu0 0.0
    %372 = vmatpush1.xpose.msra.mxu0 0.0
    %373 = vmatprep.subr.mxu0 0.0
    %374 = vmatpush1.xpose.msra.mxu0 0.0
    %375 = vmatprep.subr.mxu0 0.0
    %376 = vmatpush1.xpose.msra.mxu0 0.0
    %377 = vmatprep.subr.mxu0 0.0
    %378 = vmatpush1.xpose.msra.mxu0 0.0
    %379 = vmatprep.subr.mxu0 0.0
    %380 = vmatpush1.xpose.msra.mxu0 0.0
    %381 = vmatprep.subr.mxu0 0.0
    %382 = vmatpush1.xpose.msra.mxu0 0.0
    %383 = vmatprep.subr.mxu0 0.0
    %384 = vmatpush1.xpose.msra.mxu0 0.0
    %385 = vmatprep.subr.mxu0 0.0
    %386 = vmatpush1.xpose.msra.mxu0 0.0
    %387 = vmatprep.subr.mxu0 0.0
    %388 = vmatpush1.xpose.msra.mxu0 0.0
    %389 = vmatprep.subr.mxu0 0.0
    %390 = vmatpush1.xpose.msra.mxu0 0.0
    %391 = vmatprep.subr.mxu0 0.0
    %392 = vmatpush1.xpose.msra.mxu0 0.0
    %393 = vmatprep.subr.mxu0 0.0
    %394 = vmatpush1.xpose.msra.mxu0 0.0
    %395 = vmatprep.subr.mxu0 0.0
    %396 = vmatpush1.xpose.msra.mxu0 0.0
    %397 = vmatprep.mubr.f32.mxu0 0.0
    %398 = vmatmul.mubr.f32.gmra.mrb[0].mxu0 %v331
    %v399 = vpop.f32.mrb[0].mxu0
    %v400 = vadd.f32 0.0, %v399
    %v401 = vpop.f32.mrb[0].mxu0
    %402 = vdwg.mxu0
    %v403 = vsel %vm329, %v328, 0.0
    %404 = vadd.xlane.f32.xlu0 %v403
    %v405 = vpop.xlane.xlu0 %404
    %v406 = vsub.f32 %v405, %v400
    %vm407 = vcmp.gt.f32.partialorder %v406, 0.0
    %v408 = vsel %vm407, %v406, 1.0
    %v409 = vrcp.pop %v408
    %v410 = vmul.f32 1.0, %v409
    %v411 = vsel %vm407, %v410, 0.0
    %412 = vmatprep.subr.mxu0 0.0
    %413 = vmatpush1.xpose.msra.mxu0 %v327
    %414 = vmatprep.subr.mxu0 0.0
    %415 = vmatpush1.xpose.msra.mxu0 0.0
    %416 = vmatprep.subr.mxu0 0.0
    %417 = vmatpush1.xpose.msra.mxu0 0.0
    %418 = vmatprep.subr.mxu0 0.0
    %419 = vmatpush1.xpose.msra.mxu0 0.0
    %420 = vmatprep.subr.mxu0 0.0
    %421 = vmatpush1.xpose.msra.mxu0 0.0
    %422 = vmatprep.subr.mxu0 0.0
    %423 = vmatpush1.xpose.msra.mxu0 0.0
    %424 = vmatprep.subr.mxu0 0.0
    %425 = vmatpush1.xpose.msra.mxu0 0.0
    %426 = vmatprep.subr.mxu0 0.0
    %427 = vmatpush1.xpose.msra.mxu0 0.0
    %428 = vmatprep.subr.mxu0 0.0
    %429 = vmatpush1.xpose.msra.mxu0 0.0
    %430 = vmatprep.subr.mxu0 0.0
    %431 = vmatpush1.xpose.msra.mxu0 0.0
    %432 = vmatprep.subr.mxu0 0.0
    %433 = vmatpush1.xpose.msra.mxu0 0.0
    %434 = vmatprep.subr.mxu0 0.0
    %435 = vmatpush1.xpose.msra.mxu0 0.0
    %436 = vmatprep.subr.mxu0 0.0
    %437 = vmatpush1.xpose.msra.mxu0 0.0
    %438 = vmatprep.subr.mxu0 0.0
    %439 = vmatpush1.xpose.msra.mxu0 0.0
    %440 = vmatprep.subr.mxu0 0.0
    %441 = vmatpush1.xpose.msra.mxu0 0.0
    %442 = vmatprep.subr.mxu0 0.0
    %443 = vmatpush1.xpose.msra.mxu0 0.0
    %444 = vmatprep.subr.mxu0 0.0
    %445 = vmatpush1.xpose.msra.mxu0 0.0
    %446 = vmatprep.subr.mxu0 0.0
    %447 = vmatpush1.xpose.msra.mxu0 0.0
    %448 = vmatprep.subr.mxu0 0.0
    %449 = vmatpush1.xpose.msra.mxu0 0.0
    %450 = vmatprep.subr.mxu0 0.0
    %451 = vmatpush1.xpose.msra.mxu0 0.0
    %452 = vmatprep.subr.mxu0 0.0
    %453 = vmatpush1.xpose.msra.mxu0 0.0
    %454 = vmatprep.subr.mxu0 0.0
    %455 = vmatpush1.xpose.msra.mxu0 0.0
    %456 = vmatprep.subr.mxu0 0.0
    %457 = vmatpush1.xpose.msra.mxu0 0.0
    %458 = vmatprep.subr.mxu0 0.0
    %459 = vmatpush1.xpose.msra.mxu0 0.0
    %460 = vmatprep.subr.mxu0 0.0
    %461 = vmatpush1.xpose.msra.mxu0 0.0
    %462 = vmatprep.subr.mxu0 0.0
    %463 = vmatpush1.xpose.msra.mxu0 0.0
    %464 = vmatprep.subr.mxu0 0.0
    %465 = vmatpush1.xpose.msra.mxu0 0.0
    %466 = vmatprep.subr.mxu0 0.0
    %467 = vmatpush1.xpose.msra.mxu0 0.0
    %468 = vmatprep.subr.mxu0 0.0
    %469 = vmatpush1.xpose.msra.mxu0 0.0
    %470 = vmatprep.subr.mxu0 0.0
    %471 = vmatpush1.xpose.msra.mxu0 0.0
    %472 = vmatprep.subr.mxu0 0.0
    %473 = vmatpush1.xpose.msra.mxu0 0.0
    %474 = vmatprep.subr.mxu0 0.0
    %475 = vmatpush1.xpose.msra.mxu0 0.0
    %476 = vmatprep.mubr.f32.mxu0 0.0
    %477 = vmatmul.mubr.f32.gmra.mrb[0].mxu0 %v321
    %v478 = vpop.f32.mrb[0].mxu0
    %v479 = vadd.f32 1.0, %v478
    %v480 = vpop.f32.mrb[0].mxu0
    %481 = vdwg.mxu0
    %v482 = vmul.f32 %v479, 0.5
    %v483 = vmul.f32 %v482, %v411
    %vm484 = vcmask 64512
    %485 = vst.msk [vmem:[#allocation13] sm:$0xff] %vm484, %v483
    %486 = vmatprep.subr.mxu0 0.0
    %487 = vmatpush1.xpose.msra.mxu0 %v321
    %488 = vmatprep.subr.mxu0 0.0
    %489 = vmatpush1.xpose.msra.mxu0 0.0
    %490 = vmatprep.subr.mxu0 0.0
    %491 = vmatpush1.xpose.msra.mxu0 0.0
    %492 = vmatprep.subr.mxu0 0.0
    %493 = vmatpush1.xpose.msra.mxu0 0.0
    %494 = vmatprep.subr.mxu0 0.0
    %495 = vmatpush1.xpose.msra.mxu0 0.0
    %496 = vmatprep.subr.mxu0 0.0
    %497 = vmatpush1.xpose.msra.mxu0 0.0
    %498 = vmatprep.subr.mxu0 0.0
    %499 = vmatpush1.xpose.msra.mxu0 0.0
    %500 = vmatprep.subr.mxu0 0.0
    %501 = vmatpush1.xpose.msra.mxu0 0.0
    %502 = vmatprep.subr.mxu0 0.0
    %503 = vmatpush1.xpose.msra.mxu0 0.0
    %504 = vmatprep.subr.mxu0 0.0
    %505 = vmatpush1.xpose.msra.mxu0 0.0
    %506 = vmatprep.subr.mxu0 0.0
    %507 = vmatpush1.xpose.msra.mxu0 0.0
    %508 = vmatprep.subr.mxu0 0.0
    %509 = vmatpush1.xpose.msra.mxu0 0.0
    %510 = vmatprep.subr.mxu0 0.0
    %511 = vmatpush1.xpose.msra.mxu0 0.0
    %512 = vmatprep.subr.mxu0 0.0
    %513 = vmatpush1.xpose.msra.mxu0 0.0
    %514 = vmatprep.subr.mxu0 0.0
    %515 = vmatpush1.xpose.msra.mxu0 0.0
    %516 = vmatprep.subr.mxu0 0.0
    %517 = vmatpush1.xpose.msra.mxu0 0.0
    %518 = vmatprep.subr.mxu0 0.0
    %519 = vmatpush1.xpose.msra.mxu0 0.0
    %520 = vmatprep.subr.mxu0 0.0
    %521 = vmatpush1.xpose.msra.mxu0 0.0
    %522 = vmatprep.subr.mxu0 0.0
    %523 = vmatpush1.xpose.msra.mxu0 0.0
    %524 = vmatprep.subr.mxu0 0.0
    %525 = vmatpush1.xpose.msra.mxu0 0.0
    %526 = vmatprep.subr.mxu0 0.0
    %527 = vmatpush1.xpose.msra.mxu0 0.0
    %528 = vmatprep.subr.mxu0 0.0
    %529 = vmatpush1.xpose.msra.mxu0 0.0
    %530 = vmatprep.subr.mxu0 0.0
    %531 = vmatpush1.xpose.msra.mxu0 0.0
    %532 = vmatprep.subr.mxu0 0.0
    %533 = vmatpush1.xpose.msra.mxu0 0.0
    %534 = vmatprep.subr.mxu0 0.0
    %535 = vmatpush1.xpose.msra.mxu0 0.0
    %536 = vmatprep.subr.mxu0 0.0
    %537 = vmatpush1.xpose.msra.mxu0 0.0
    %538 = vmatprep.subr.mxu0 0.0
    %539 = vmatpush1.xpose.msra.mxu0 0.0
    %540 = vmatprep.subr.mxu0 0.0
    %541 = vmatpush1.xpose.msra.mxu0 0.0
    %542 = vmatprep.subr.mxu0 0.0
    %543 = vmatpush1.xpose.msra.mxu0 0.0
    %544 = vmatprep.subr.mxu0 0.0
    %545 = vmatpush1.xpose.msra.mxu0 0.0
    %546 = vmatprep.subr.mxu0 0.0
    %547 = vmatpush1.xpose.msra.mxu0 0.0
    %548 = vmatprep.subr.mxu0 0.0
    %549 = vmatpush1.xpose.msra.mxu0 0.0
    %550 = vmatprep.mubr.f32.mxu0 0.0
    %551 = vmatmul.mubr.f32.gmra.mrb[0].mxu0 %v327
    %v552 = vpop.f32.mrb[0].mxu0
    %v553 = vadd.f32 1.0, %v552
    %v554 = vpop.f32.mrb[0].mxu0
    %555 = vdwg.mxu0
    %v556 = vmul.f32 %v553, 0.5
    %v557 = vmul.f32 %v556, %v411
    %558 = vst.msk [vmem:[#allocation14] sm:$0xff] %vm484, %v557
    // Predicated region
    $region54: #{tpu_custom_call.1} parent=1 // pred_check
      _
    $region55: #{tpu_custom_call.1} parent=1 // pred_check_branch
      %560 = sbr.rel (0) target = $region57
    $region56: #{tpu_custom_call.1} parent=1 // pred_region
      %s562 = ssub.s32 128, 128
      %563 = vsyncadd [#allocation4], %s562
      %s565 = sshll.u32 [#allocation10], 4
      %s566 = int_to_ptr.vmem [resolvable:$true] %s565
      %568 = dma.vmem_to_hbm [thread:$0]  %s566, 128, %s9, [#allocation4]
    $region57: #{tpu_custom_call.1} parent=1 // pred_fallthru
      _
    // Predicated region
    $region58: #{tpu_custom_call.1} parent=1 // pred_check
      _
    $region59: #{tpu_custom_call.1} parent=1 // pred_check_branch
      %570 = sbr.rel (0) target = $region61
    $region60: #{tpu_custom_call.1} parent=1 // pred_region
      %s572 = ssub.s32 128, 128
      %573 = vsyncadd [#allocation12], %s572
      %s575 = sshll.u32 [#allocation11], 4
      %s576 = int_to_ptr.vmem [resolvable:$true] %s575
      %578 = dma.vmem_to_hbm [thread:$0]  %s576, 128, %s10, [#allocation12]
    $region61: #{tpu_custom_call.1} parent=1 // pred_fallthru
      _
    // Predicated region
    $region62: #{tpu_custom_call.1} parent=1 // pred_check
      _
    $region63: #{tpu_custom_call.1} parent=1 // pred_check_branch
      %580 = sbr.rel (0) target = $region65
    $region64: #{tpu_custom_call.1} parent=1 // pred_region
      %s582 = ssub.s32 128, 128
      %583 = vsyncadd [#allocation12], %s582
      %s585 = sshll.u32 [#allocation13], 4
      %s586 = int_to_ptr.vmem [resolvable:$true] %s585
      %588 = dma.vmem_to_hbm [thread:$0]  %s586, 128, %s11, [#allocation12]
    $region65: #{tpu_custom_call.1} parent=1 // pred_fallthru
      _
    // Predicated region
    $region66: #{tpu_custom_call.1} parent=1 // pred_check
      _
    $region67: #{tpu_custom_call.1} parent=1 // pred_check_branch
      %590 = sbr.rel (0) target = $region69
    $region68: #{tpu_custom_call.1} parent=1 // pred_region
      %s592 = ssub.s32 128, 128
      %593 = vsyncadd [#allocation15], %s592
      %s595 = sshll.u32 [#allocation14], 4
      %s596 = int_to_ptr.vmem [resolvable:$true] %s595
      %598 = dma.vmem_to_hbm [thread:$0]  %s596, 128, %s12, [#allocation15]
    $region69: #{tpu_custom_call.1} parent=1 // pred_fallthru
      _
    // Predicated region
    $region70: #{tpu_custom_call.1} parent=1 // pred_check
      _
    $region71: #{tpu_custom_call.1} parent=1 // pred_check_branch
      %600 = sbr.rel (0) target = $region73
    $region72: #{tpu_custom_call.1} parent=1 // pred_region
      %601 = dma.done [#allocation4], 128
    $region73: #{tpu_custom_call.1} parent=1 // pred_fallthru
      _
    // Predicated region
    $region74: #{tpu_custom_call.1} parent=1 // pred_check
      _
    $region75: #{tpu_custom_call.1} parent=1 // pred_check_branch
      %603 = sbr.rel (0) target = $region77
    $region76: #{tpu_custom_call.1} parent=1 // pred_region
      %604 = dma.done [#allocation12], 128
    $region77: #{tpu_custom_call.1} parent=1 // pred_fallthru
      _
    // Predicated region
    $region78: #{tpu_custom_call.1} parent=1 // pred_check
      _
    $region79: #{tpu_custom_call.1} parent=1 // pred_check_branch
      %606 = sbr.rel (0) target = $region81
    $region80: #{tpu_custom_call.1} parent=1 // pred_region
      %607 = dma.done [#allocation12], 128
    $region81: #{tpu_custom_call.1} parent=1 // pred_fallthru
      _
    // Predicated region
    $region82: #{tpu_custom_call.1} parent=1 // pred_check
      _
    $region83: #{tpu_custom_call.1} parent=1 // pred_check_branch
      %609 = sbr.rel (0) target = $region85
    $region84: #{tpu_custom_call.1} parent=1 // pred_region
      %610 = dma.done [#allocation15], 128
    $region85: #{tpu_custom_call.1} parent=1 // pred_fallthru
      _
    %611 = vsyncpa [#allocation3], 1
    %612 = vsyncpa [#allocation6], 1
    %613 = vsyncpa [#allocation9], 1
    %614 = vsyncpa [#allocation4], 1
    %615 = vsyncpa [#allocation12], 1
    %616 = vsyncpa [#allocation15], 1

</llo_original>
